<compile_context>
chip_gen: v7x
topology: tpu7x:2x2x1
jax: 0.10.0
libtpu: 0.0.40
codegen_flags: <defaults>
</compile_context>

<pallas_src>
import jax
import jax.numpy as jnp
from jax import lax
from jax.experimental import pallas as pl
from jax.experimental.pallas import tpu as pltpu

K_TOP = 5
SUB = 8                              # f32 sublane sub-tile (one vreg row-group)
MAX_ROW_TILE = 512                   # rows per grid step (upper bound)
MAX_BLOCK_BYTES = 4 * 1024 * 1024    # per input block (x2 for double buffering)


def _topk_pool_kernel(x_ref, o_ref):
    # x_ref: (ROW_TILE, n) block in VMEM; o_ref: (ROW_TILE, 1) block.
    row_tile, n = x_ref.shape
    nsub = row_tile // SUB
    neg_inf = jnp.float32(-jnp.inf)
    inv_k = jnp.float32(1.0 / K_TOP)

    def subtile_body(r, carry):
        off = pl.multiple_of(r * SUB, SUB)
        # Per-sub-tile working copy: 8 x n stays register-resident for
        # typical spatial sizes (n up to a few thousand).
        xi0 = x_ref[pl.ds(off, SUB), :].astype(jnp.float32)        # (SUB, n)

        def knock(_, state):
            xi, acc, k_rem = state
            m = jnp.max(xi, axis=-1, keepdims=True)                # (SUB, 1)
            is_max = xi == m
            cnt = jnp.sum(jnp.where(is_max, 1.0, 0.0), axis=-1, keepdims=True)
            take = jnp.minimum(cnt, k_rem)
            # Guard so that -inf * 0 never reaches the accumulator.
            acc = acc + jnp.where(take > 0.0, m * take, 0.0)
            k_rem = k_rem - take
            xi = jnp.where(is_max, neg_inf, xi)                    # knock out all ties
            return xi, acc, k_rem

        acc0 = jnp.zeros((SUB, 1), jnp.float32)
        k0 = jnp.full((SUB, 1), float(K_TOP), jnp.float32)
        _, acc, _ = lax.fori_loop(0, K_TOP, knock, (xi0, acc0, k0), unroll=True)

        o_ref[pl.ds(off, SUB), :] = (acc * inv_k).astype(o_ref.dtype)
        return carry

    lax.fori_loop(0, nsub, subtile_body, 0)


def _round_up(v, m):
    return (v + m - 1) // m * m


def _pick_row_tile(rows, n, itemsize):
    # Largest multiple of SUB such that one (row_tile, n) input block stays
    # under MAX_BLOCK_BYTES, capped at MAX_ROW_TILE and at the row count.
    by_bytes = max(SUB, (MAX_BLOCK_BYTES // max(1, n * itemsize)) // SUB * SUB)
    rt = max(SUB, min(MAX_ROW_TILE, by_bytes, _round_up(rows, SUB)))
    # Keep >= 2 grid steps when there is enough work so the two v7x
    # TensorCores can each take a share of the "parallel" grid axis.
    if pl.cdiv(rows, rt) < 2 and rows > 2 * SUB:
        rt = max(SUB, _round_up(pl.cdiv(rows, 2), SUB))
    return rt


@jax.jit
def topk_pool(x):
    """x: (b, c, h, w) float array -> (b, c) mean of the top-5 spatial values."""
    b, c, h, w = x.shape
    n = h * w
    assert n >= K_TOP, "need at least 5 spatial elements"
    rows = b * c
    x2 = x.reshape(rows, n)          # free reshape; no padding, no extra HBM copy

    itemsize = jnp.dtype(x.dtype).itemsize
    row_tile = _pick_row_tile(rows, n, itemsize)
    grid = (pl.cdiv(rows, row_tile),)   # partial last block handled by Pallas masking

    # NOTE: if the input is bf16, the HBM/VMEM block stays bf16 (half the
    # traffic); only the 8-row sub-tile is promoted to f32 for the compare /
    # knockout math, which is required on v5e (no bf16 VPU) and cheap elsewhere.
    out = pl.pallas_call(
        _topk_pool_kernel,
        out_shape=jax.ShapeDtypeStruct((rows, 1), x.dtype),
        grid_spec=pltpu.PrefetchScalarGridSpec(
            num_scalar_prefetch=0,
            grid=grid,
            in_specs=[pl.BlockSpec((row_tile, n), lambda i: (i, 0))],
            out_specs=pl.BlockSpec((row_tile, 1), lambda i: (i, 0)),
        ),
        compiler_params=pltpu.CompilerParams(
            dimension_semantics=("parallel",),
            vmem_limit_bytes=32 * 1024 * 1024,
        ),
    )(x2)

    return out[:, 0].reshape(b, c)


def _reference(x):
    # pure-JAX reference of the PyTorch forward
    b, c, h, w = x.shape
    flat = x.reshape(b, c, h * w)
    topv = lax.top_k(flat, K_TOP)[0]
    return topv.mean(axis=-1)


if __name__ == "__main__":
    key = jax.random.PRNGKey(0)
    x = jax.random.normal(key, (2, 4, 16, 16), dtype=jnp.float32)

    out = jax.block_until_ready(topk_pool(x))

    ref = _reference(x)
    assert out.shape == (2, 4)
    assert jnp.allclose(out, ref, atol=1e-5, rtol=1e-5), (out, ref)
    print("KERNEL_OK")
</pallas_src>

<mosaic_0001>
module attributes {stable_mosaic.version = 11 : i64} {
  func.func @_topk_pool_kernel(%arg0: i32, %arg1: memref<8x256xf32, #tpu.memory_space<vmem>>, %arg2: memref<8x1xf32, #tpu.memory_space<vmem>>) attributes {dimension_semantics = [#tpu.dimension_semantics<parallel>], iteration_bounds = array<i64: 1>, scalar_prefetch = 0 : i64, scratch_operands = 0 : i64, tpu.core_type = #tpu.core_type<tc>, window_params = [{transform_indices = @transform_0, window_bounds = array<i64: 8, 256>}, {transform_indices = @transform_1, window_bounds = array<i64: 8, 1>}]} {
    %cst = arith.constant 0xFF800000 : f32
    %cst_0 = arith.constant 2.000000e-01 : f32
    %c0_i32 = arith.constant 0 : i32
    %c8_i32 = arith.constant 8 : i32
    %0 = arith.muli %c0_i32, %c8_i32 : i32
    %1 = tpu.assume_multiple %0, 8 : i32
    %2 = arith.index_cast %1 : i32 to index
    %c0 = arith.constant 0 : index
    %3 = vector.load %arg1[%2, %c0] : memref<8x256xf32, #tpu.memory_space<vmem>>, vector<8x256xf32>
    %cst_1 = arith.constant 0.000000e+00 : f32
    %4 = vector.broadcast %cst_1 : f32 to vector<8x1xf32>
    %cst_2 = arith.constant 5.000000e+00 : f32
    %5 = vector.broadcast %cst_2 : f32 to vector<8x1xf32>
    %c0_i32_3 = arith.constant 0 : i32
    %cst_4 = arith.constant dense<0xFF800000> : vector<8xf32>
    %6 = vector.multi_reduction <maximumf>, %3, %cst_4 [1] : vector<8x256xf32> to vector<8xf32>
    %7 = vector.shape_cast %6 : vector<8xf32> to vector<8x1xf32>
    %8 = vector.broadcast %7 : vector<8x1xf32> to vector<8x256xf32>
    %9 = arith.cmpf oeq, %3, %8 : vector<8x256xf32>
    %cst_5 = arith.constant 1.000000e+00 : f32
    %cst_6 = arith.constant 0.000000e+00 : f32
    %10 = vector.broadcast %cst_5 : f32 to vector<8x256xf32>
    %11 = vector.broadcast %cst_6 : f32 to vector<8x256xf32>
    %12 = arith.select %9, %10, %11 : vector<8x256xi1>, vector<8x256xf32>
    %cst_7 = arith.constant dense<0.000000e+00> : vector<8xf32>
    %13 = vector.multi_reduction <add>, %12, %cst_7 [1] : vector<8x256xf32> to vector<8xf32>
    %14 = vector.shape_cast %13 : vector<8xf32> to vector<8x1xf32>
    %15 = arith.minimumf %14, %5 : vector<8x1xf32>
    %cst_8 = arith.constant 0.000000e+00 : f32
    %16 = vector.broadcast %cst_8 : f32 to vector<8x1xf32>
    %17 = arith.cmpf ogt, %15, %16 : vector<8x1xf32>
    %18 = arith.mulf %7, %15 : vector<8x1xf32>
    %cst_9 = arith.constant 0.000000e+00 : f32
    %19 = vector.broadcast %cst_9 : f32 to vector<8x1xf32>
    %20 = arith.select %17, %18, %19 : vector<8x1xi1>, vector<8x1xf32>
    %21 = arith.addf %4, %20 : vector<8x1xf32>
    %22 = arith.subf %5, %15 : vector<8x1xf32>
    %23 = vector.broadcast %cst : f32 to vector<8x256xf32>
    %24 = arith.select %9, %23, %3 : vector<8x256xi1>, vector<8x256xf32>
    %c1_i32 = arith.constant 1 : i32
    %cst_10 = arith.constant dense<0xFF800000> : vector<8xf32>
    %25 = vector.multi_reduction <maximumf>, %24, %cst_10 [1] : vector<8x256xf32> to vector<8xf32>
    %26 = vector.shape_cast %25 : vector<8xf32> to vector<8x1xf32>
    %27 = vector.broadcast %26 : vector<8x1xf32> to vector<8x256xf32>
    %28 = arith.cmpf oeq, %24, %27 : vector<8x256xf32>
    %cst_11 = arith.constant 1.000000e+00 : f32
    %cst_12 = arith.constant 0.000000e+00 : f32
    %29 = vector.broadcast %cst_11 : f32 to vector<8x256xf32>
    %30 = vector.broadcast %cst_12 : f32 to vector<8x256xf32>
    %31 = arith.select %28, %29, %30 : vector<8x256xi1>, vector<8x256xf32>
    %cst_13 = arith.constant dense<0.000000e+00> : vector<8xf32>
    %32 = vector.multi_reduction <add>, %31, %cst_13 [1] : vector<8x256xf32> to vector<8xf32>
    %33 = vector.shape_cast %32 : vector<8xf32> to vector<8x1xf32>
    %34 = arith.minimumf %33, %22 : vector<8x1xf32>
    %cst_14 = arith.constant 0.000000e+00 : f32
    %35 = vector.broadcast %cst_14 : f32 to vector<8x1xf32>
    %36 = arith.cmpf ogt, %34, %35 : vector<8x1xf32>
    %37 = arith.mulf %26, %34 : vector<8x1xf32>
    %cst_15 = arith.constant 0.000000e+00 : f32
    %38 = vector.broadcast %cst_15 : f32 to vector<8x1xf32>
    %39 = arith.select %36, %37, %38 : vector<8x1xi1>, vector<8x1xf32>
    %40 = arith.addf %21, %39 : vector<8x1xf32>
    %41 = arith.subf %22, %34 : vector<8x1xf32>
    %42 = vector.broadcast %cst : f32 to vector<8x256xf32>
    %43 = arith.select %28, %42, %24 : vector<8x256xi1>, vector<8x256xf32>
    %c2_i32 = arith.constant 2 : i32
    %cst_16 = arith.constant dense<0xFF800000> : vector<8xf32>
    %44 = vector.multi_reduction <maximumf>, %43, %cst_16 [1] : vector<8x256xf32> to vector<8xf32>
    %45 = vector.shape_cast %44 : vector<8xf32> to vector<8x1xf32>
    %46 = vector.broadcast %45 : vector<8x1xf32> to vector<8x256xf32>
    %47 = arith.cmpf oeq, %43, %46 : vector<8x256xf32>
    %cst_17 = arith.constant 1.000000e+00 : f32
    %cst_18 = arith.constant 0.000000e+00 : f32
    %48 = vector.broadcast %cst_17 : f32 to vector<8x256xf32>
    %49 = vector.broadcast %cst_18 : f32 to vector<8x256xf32>
    %50 = arith.select %47, %48, %49 : vector<8x256xi1>, vector<8x256xf32>
    %cst_19 = arith.constant dense<0.000000e+00> : vector<8xf32>
    %51 = vector.multi_reduction <add>, %50, %cst_19 [1] : vector<8x256xf32> to vector<8xf32>
    %52 = vector.shape_cast %51 : vector<8xf32> to vector<8x1xf32>
    %53 = arith.minimumf %52, %41 : vector<8x1xf32>
    %cst_20 = arith.constant 0.000000e+00 : f32
    %54 = vector.broadcast %cst_20 : f32 to vector<8x1xf32>
    %55 = arith.cmpf ogt, %53, %54 : vector<8x1xf32>
    %56 = arith.mulf %45, %53 : vector<8x1xf32>
    %cst_21 = arith.constant 0.000000e+00 : f32
    %57 = vector.broadcast %cst_21 : f32 to vector<8x1xf32>
    %58 = arith.select %55, %56, %57 : vector<8x1xi1>, vector<8x1xf32>
    %59 = arith.addf %40, %58 : vector<8x1xf32>
    %60 = arith.subf %41, %53 : vector<8x1xf32>
    %61 = vector.broadcast %cst : f32 to vector<8x256xf32>
    %62 = arith.select %47, %61, %43 : vector<8x256xi1>, vector<8x256xf32>
    %c3_i32 = arith.constant 3 : i32
    %cst_22 = arith.constant dense<0xFF800000> : vector<8xf32>
    %63 = vector.multi_reduction <maximumf>, %62, %cst_22 [1] : vector<8x256xf32> to vector<8xf32>
    %64 = vector.shape_cast %63 : vector<8xf32> to vector<8x1xf32>
    %65 = vector.broadcast %64 : vector<8x1xf32> to vector<8x256xf32>
    %66 = arith.cmpf oeq, %62, %65 : vector<8x256xf32>
    %cst_23 = arith.constant 1.000000e+00 : f32
    %cst_24 = arith.constant 0.000000e+00 : f32
    %67 = vector.broadcast %cst_23 : f32 to vector<8x256xf32>
    %68 = vector.broadcast %cst_24 : f32 to vector<8x256xf32>
    %69 = arith.select %66, %67, %68 : vector<8x256xi1>, vector<8x256xf32>
    %cst_25 = arith.constant dense<0.000000e+00> : vector<8xf32>
    %70 = vector.multi_reduction <add>, %69, %cst_25 [1] : vector<8x256xf32> to vector<8xf32>
    %71 = vector.shape_cast %70 : vector<8xf32> to vector<8x1xf32>
    %72 = arith.minimumf %71, %60 : vector<8x1xf32>
    %cst_26 = arith.constant 0.000000e+00 : f32
    %73 = vector.broadcast %cst_26 : f32 to vector<8x1xf32>
    %74 = arith.cmpf ogt, %72, %73 : vector<8x1xf32>
    %75 = arith.mulf %64, %72 : vector<8x1xf32>
    %cst_27 = arith.constant 0.000000e+00 : f32
    %76 = vector.broadcast %cst_27 : f32 to vector<8x1xf32>
    %77 = arith.select %74, %75, %76 : vector<8x1xi1>, vector<8x1xf32>
    %78 = arith.addf %59, %77 : vector<8x1xf32>
    %79 = arith.subf %60, %72 : vector<8x1xf32>
    %80 = vector.broadcast %cst : f32 to vector<8x256xf32>
    %81 = arith.select %66, %80, %62 : vector<8x256xi1>, vector<8x256xf32>
    %c4_i32 = arith.constant 4 : i32
    %cst_28 = arith.constant dense<0xFF800000> : vector<8xf32>
    %82 = vector.multi_reduction <maximumf>, %81, %cst_28 [1] : vector<8x256xf32> to vector<8xf32>
    %83 = vector.shape_cast %82 : vector<8xf32> to vector<8x1xf32>
    %84 = vector.broadcast %83 : vector<8x1xf32> to vector<8x256xf32>
    %85 = arith.cmpf oeq, %81, %84 : vector<8x256xf32>
    %cst_29 = arith.constant 1.000000e+00 : f32
    %cst_30 = arith.constant 0.000000e+00 : f32
    %86 = vector.broadcast %cst_29 : f32 to vector<8x256xf32>
    %87 = vector.broadcast %cst_30 : f32 to vector<8x256xf32>
    %88 = arith.select %85, %86, %87 : vector<8x256xi1>, vector<8x256xf32>
    %cst_31 = arith.constant dense<0.000000e+00> : vector<8xf32>
    %89 = vector.multi_reduction <add>, %88, %cst_31 [1] : vector<8x256xf32> to vector<8xf32>
    %90 = vector.shape_cast %89 : vector<8xf32> to vector<8x1xf32>
    %91 = arith.minimumf %90, %79 : vector<8x1xf32>
    %cst_32 = arith.constant 0.000000e+00 : f32
    %92 = vector.broadcast %cst_32 : f32 to vector<8x1xf32>
    %93 = arith.cmpf ogt, %91, %92 : vector<8x1xf32>
    %94 = arith.mulf %83, %91 : vector<8x1xf32>
    %cst_33 = arith.constant 0.000000e+00 : f32
    %95 = vector.broadcast %cst_33 : f32 to vector<8x1xf32>
    %96 = arith.select %93, %94, %95 : vector<8x1xi1>, vector<8x1xf32>
    %97 = arith.addf %78, %96 : vector<8x1xf32>
    %98 = arith.subf %79, %91 : vector<8x1xf32>
    %99 = vector.broadcast %cst : f32 to vector<8x256xf32>
    %100 = arith.select %85, %99, %81 : vector<8x256xi1>, vector<8x256xf32>
    %101 = vector.broadcast %cst_0 : f32 to vector<8x1xf32>
    %102 = arith.mulf %97, %101 : vector<8x1xf32>
    %103 = arith.index_cast %1 : i32 to index
    %c0_34 = arith.constant 0 : index
    %104 = vector.load %arg2[%103, %c0_34] : memref<8x1xf32, #tpu.memory_space<vmem>>, vector<8x1xf32>
    tpu.vector_store %arg2[%103, %c0_34], %102 {strides = array<i32>} : memref<8x1xf32, #tpu.memory_space<vmem>>, vector<8x1xf32>,
    %c1_i32_35 = arith.constant 1 : i32
    return
  }
  func.func @transform_0(%arg0: i32) -> (i32, i32) {
    %c0_i32 = arith.constant 0 : i32
    %c0_i32_0 = arith.constant 0 : i32
    return %arg0, %c0_i32 : i32, i32
  }
  func.func @transform_1(%arg0: i32) -> (i32, i32) {
    %c0_i32 = arith.constant 0 : i32
    %c0_i32_0 = arith.constant 0 : i32
    return %arg0, %c0_i32 : i32, i32
  }
}

</mosaic_0001>

<llo_original>
// kernel: squeeze.1
$region0: #{squeeze.1}
  %s0 = inlined_call_operand.vmem [shape: f32[8], index: 0, kind: input, shape index: {}]
  %s1 = inlined_call_operand.hbm [shape: f32[2,4], index: 1, kind: output, shape index: {}]
  $region1: #{squeeze.1} parent=0
    #allocation0 [shape = 'u8[1024]{0}', space=vmem, size = 0x400, scoped, tag = 'operand span for operand 1']
    #allocation1 [shape = 's32[1]{0}', space=sflag, size = 0x4, scoped, tag = 'scoped memory for squeeze.1']
    #allocation2 [shape = 'u8[4096]{0}', space=vmem, size = 0x1000, scoped, tag = 'scoped mem for output reshape']
    #allocation3 [shape = 'u8[4096]{0}', space=vmem, size = 0x1000, scoped, tag = 'scoped mem for input reshape']
    %2 = vsyncpa [#allocation1], 0
    %s4 = sshllo.u32 0, 1
    %v5 = vld [vmem:[%s0] sm:%s4]
    %6 = vst [vmem:[#allocation3] sm:%s4] %v5
    %v7 = vld [vmem:[#allocation3] sm:$0x1]
    %vm8 = vcmask 31744
    %9 = vst.msk [vmem:[#allocation2] sm:$0x1] %vm8, %v7
    %v10 = vld [vmem:[#allocation3] sm:$0x1]
    %11 = vrot.lane.b32.xlu0 %v10, 124
    %v12 = vpop.permute.xlu0 %11
    %vm13 = vcmask 31744
    %s14 = scalar_lea.vmem [#allocation2], 1
    %15 = vst.msk [vmem:[%s14] sm:$0x1] %vm13, %v12
    %s17 = sshllo.u32 0, 2
    %v19 = vld [vmem:[#allocation2] sm:%s17]
    %s20 = sshllo.u32 0, 2
    %21 = vst [vmem:[#allocation0] sm:%s20] %v19
    %s23 = ssub.s32 32, 32
    %24 = vsyncadd [#allocation1], %s23
    %s26 = sshll.u32 [#allocation0], 4
    %s27 = int_to_ptr.vmem [resolvable:$true] %s26
    %29 = dma.vmem_to_hbm [thread:$0]  %s27, 32, %s1, [#allocation1]
    %30 = dma.done [#allocation1], 32
    %31 = vsyncpa [#allocation1], 1

// kernel: topk_pool.1
$region0: #{topk_pool.1}
  #allocation0 [shape = 'u32[]', space=smem, size = 0x4, offset = 0x4, fixed_abs, tag = 'smem constant byte address 0x4 - core index']
  #allocation1 [shape = 'u32[144,128]{1,0:T(1,128)}', space=vmem, size = 0x12000, scoped, tag = 'internal scratch']
  %s0 = inlined_call_operand.vmem [shape: f32[8,256], index: 0, kind: input, shape index: {}]
  %s1 = inlined_call_operand.vmem [shape: f32[8,1], index: 1, kind: output, shape index: {}]
  %s2 = sld [smem:[#allocation0]]
  $region14: #{topk_pool.1} parent=0
    _
  %s4 = ssub.s32 1, %s2
  %s5 = scalar_select 0, %s4, %s2
  // Predicated region
  $region2: #{topk_pool.1} parent=0 // pred_check
    _
  $region3: #{topk_pool.1} parent=0 // pred_check_branch
    %7 = sbr.rel (0) target = $region5
  $region4: #{topk_pool.1} parent=0 // pred_region
    _
  $region5: #{topk_pool.1} parent=0 // pred_fallthru
    _
  %s8 = smul.u32 0, 2
  %s9 = smul.addr %s8, 8
  %s10 = scalar_lea.vmem %s0, %s9
  %v11 = vld [vmem:[%s10] sm:$0xff]
  %v12 = vld [vmem:[%s10 + $0x8] sm:$0xff]
  %v13 = vmax.f32 %v11, %v12
  %14 = vmax.xlane.f32.xlu0 %v13
  %v15 = vpop.xlane.xlu0 %14
  %vm16 = vcmp.eq.f32.partialorder %v11, %v15
  %vm17 = vcmp.eq.f32.partialorder %v12, %v15
  %v18 = vsel %vm16, 1.0, 0.0
  %v19 = vsel %vm17, 1.0, 0.0
  %v20 = vadd.f32 %v18, %v19
  %21 = vadd.xlane.f32.xlu0 %v20
  %v22 = vpop.xlane.xlu0 %21
  %v23 = vmin.f32 %v22, 5.0
  %vm24 = vcmp.gt.f32.partialorder %v23, 0.0
  %v25 = vmul.f32 %v15, %v23
  %v26 = vsel %vm24, %v25, 0.0
  %v27 = vadd.f32 %v26, 0.0
  %v28 = vsub.f32 5.0, %v23
  %v29 = vsel %vm16, -inf, %v11
  %v30 = vsel %vm17, -inf, %v12
  %v31 = vmax.f32 %v29, %v30
  %32 = vmax.xlane.f32.xlu0 %v31
  %v33 = vpop.xlane.xlu0 %32
  %vm34 = vcmp.eq.f32.partialorder %v29, %v33
  %vm35 = vcmp.eq.f32.partialorder %v30, %v33
  %v36 = vsel %vm34, 1.0, 0.0
  %v37 = vsel %vm35, 1.0, 0.0
  %v38 = vadd.f32 %v36, %v37
  %39 = vadd.xlane.f32.xlu0 %v38
  %v40 = vpop.xlane.xlu0 %39
  %v41 = vmin.f32 %v40, %v28
  %vm42 = vcmp.gt.f32.partialorder %v41, 0.0
  %v43 = vmul.f32 %v33, %v41
  %v44 = vsel %vm42, %v43, 0.0
  %v45 = vadd.f32 %v27, %v44
  %v46 = vsub.f32 %v28, %v41
  %v47 = vsel %vm34, -inf, %v29
  %v48 = vsel %vm35, -inf, %v30
  %v49 = vmax.f32 %v47, %v48
  %50 = vmax.xlane.f32.xlu0 %v49
  %v51 = vpop.xlane.xlu0 %50
  %vm52 = vcmp.eq.f32.partialorder %v47, %v51
  %vm53 = vcmp.eq.f32.partialorder %v48, %v51
  %v54 = vsel %vm52, 1.0, 0.0
  %v55 = vsel %vm53, 1.0, 0.0
  %v56 = vadd.f32 %v54, %v55
  %57 = vadd.xlane.f32.xlu0 %v56
  %v58 = vpop.xlane.xlu0 %57
  %v59 = vmin.f32 %v58, %v46
  %vm60 = vcmp.gt.f32.partialorder %v59, 0.0
  %v61 = vmul.f32 %v51, %v59
  %v62 = vsel %vm60, %v61, 0.0
  %v63 = vadd.f32 %v45, %v62
  %v64 = vsub.f32 %v46, %v59
  %v65 = vsel %vm52, -inf, %v47
  %v66 = vsel %vm53, -inf, %v48
  %v67 = vmax.f32 %v65, %v66
  %68 = vmax.xlane.f32.xlu0 %v67
  %v69 = vpop.xlane.xlu0 %68
  %vm70 = vcmp.eq.f32.partialorder %v65, %v69
  %vm71 = vcmp.eq.f32.partialorder %v66, %v69
  %v72 = vsel %vm70, 1.0, 0.0
  %v73 = vsel %vm71, 1.0, 0.0
  %v74 = vadd.f32 %v72, %v73
  %75 = vadd.xlane.f32.xlu0 %v74
  %v76 = vpop.xlane.xlu0 %75
  %v77 = vmin.f32 %v76, %v64
  %vm78 = vcmp.gt.f32.partialorder %v77, 0.0
  %v79 = vmul.f32 %v69, %v77
  %v80 = vsel %vm78, %v79, 0.0
  %v81 = vadd.f32 %v63, %v80
  %v82 = vsub.f32 %v64, %v77
  %v83 = vsel %vm70, -inf, %v65
  %v84 = vsel %vm71, -inf, %v66
  %v85 = vmax.f32 %v83, %v84
  %86 = vmax.xlane.f32.xlu0 %v85
  %v87 = vpop.xlane.xlu0 %86
  %vm88 = vcmp.eq.f32.partialorder %v83, %v87
  %vm89 = vcmp.eq.f32.partialorder %v84, %v87
  %v90 = vsel %vm88, 1.0, 0.0
  %v91 = vsel %vm89, 1.0, 0.0
  %v92 = vadd.f32 %v90, %v91
  %93 = vadd.xlane.f32.xlu0 %v92
  %v94 = vpop.xlane.xlu0 %93
  %v95 = vmin.f32 %v94, %v82
  %vm96 = vcmp.gt.f32.partialorder %v95, 0.0
  %v97 = vmul.f32 %v87, %v95
  %v98 = vsel %vm96, %v97, 0.0
  %v99 = vadd.f32 %v81, %v98
  %v100 = vmul.f32 %v99, 0.2
  %vm101 = vcmask 7168
  %102 = vst.msk [vmem:[%s1] sm:$0xff] %vm101, %v100
  // Predicated region
  $region6: #{topk_pool.1} parent=0 // pred_check
    _
  $region7: #{topk_pool.1} parent=0 // pred_check_branch
    %104 = sbr.rel (0) target = $region9
  $region8: #{topk_pool.1} parent=0 // pred_region
    _
  $region9: #{topk_pool.1} parent=0 // pred_fallthru
    _
  // Predicated region
  $region10: #{topk_pool.1} parent=0 // pred_check
    _
  $region11: #{topk_pool.1} parent=0 // pred_check_branch
    %106 = sbr.rel (0) target = $region13
  $region12: #{topk_pool.1} parent=0 // pred_region
    _
  $region13: #{topk_pool.1} parent=0 // pred_fallthru
    _

</llo_original>
